<compile_context>
chip_gen: v7x
topology: tpu7x:2x2x1
jax: 0.10.0
libtpu: 0.0.40
codegen_flags: <defaults>
</compile_context>

<pallas_src>
import functools

import jax
import jax.numpy as jnp
from jax.experimental import pallas as pl
from jax.experimental.pallas import tpu as pltpu


HID_DIM = 1280  # hard-coded inside ValuePredictionHead
OUT_DIM = 1


def _mlp_kernel(x_ref, w1_ref, b1_ref, w2_ref, b2_ref, out_ref, acc_ref):
    """One (batch-tile, K-tile) step of Linear -> ReLU -> (row-dot) Linear."""
    k = pl.program_id(1)

    @pl.when(k == 0)
    def _init():
        acc_ref[...] = jnp.zeros_like(acc_ref)

    # Layer 1 partial product on the MXU, f32 accumulation (inputs stay in native dtype).
    acc_ref[...] += jnp.dot(
        x_ref[...], w1_ref[...], preferred_element_type=jnp.float32
    )

    @pl.when(k == pl.num_programs(1) - 1)
    def _finalize():
        h = acc_ref[...] + b1_ref[...].astype(jnp.float32)
        h = jnp.maximum(h, 0.0)  # ReLU (dropout is identity in eval)
        # Layer 2 (hid -> 1) as a VPU mul + lane reduction instead of an N=1 MXU matmul.
        w2_row = w2_ref[...].astype(jnp.float32)               # (1, HID)
        y = jnp.sum(h * w2_row, axis=-1, keepdims=True)        # (TB, 1)
        y = y + b2_ref[0, 0]                                   # scalar bias from SMEM
        out_ref[...] = y.astype(out_ref.dtype)


def _choose_tiles(B, H, itemsize):
    """Pick batch / hidden-size tiles that respect (8,128) rules and VMEM budgets."""
    # Batch tile: full batch if small, otherwise 256 rows (multiple of 8, MXU friendly).
    TB = B if B <= 256 else 256
    # K tile: keep each (TK, 1280) w1 block <= ~8 MiB; TK must divide H exactly so padded
    # K-columns never contaminate the accumulator.
    TK = H
    if H * HID_DIM * itemsize > 8 * 1024 * 1024:
        for cand in (1024, 512, 256, 128):
            if H % cand == 0:
                TK = cand
                break
    return TB, TK


@jax.jit
def value_prediction_head(pooled_output, w1, b1, w2_row, b2):
    """Fused MLP head.  Returns value_pred with shape (B, 1).

    pooled_output: (B, H)   w1: (H, 1280)   b1: (1, 1280)
    w2_row:        (1, 1280)                b2: (1, 1)
    """
    B, H = pooled_output.shape
    in_isz = jnp.dtype(pooled_output.dtype).itemsize
    out_isz = in_isz
    TB, TK = _choose_tiles(B, H, in_isz)
    nb = pl.cdiv(B, TB)
    nk = pl.cdiv(H, TK)

    # VMEM budget: double-buffered x/w1/row blocks + lane-padded out + f32 accumulator.
    vmem_est = 2 * (TB * TK * in_isz + TK * HID_DIM * in_isz
                    + 2 * HID_DIM * in_isz + TB * 128 * out_isz)
    vmem_est += TB * HID_DIM * 4
    vmem_limit = int(min(max(2 * vmem_est, 16 * 1024 * 1024), 64 * 1024 * 1024))

    cost = pl.CostEstimate(
        flops=2 * B * H * HID_DIM + 3 * B * HID_DIM,
        transcendentals=0,
        bytes_accessed=(pooled_output.size + w1.size + b1.size + w2_row.size) * in_isz
        + b2.size * 4 + B * OUT_DIM * out_isz,
    )

    out = pl.pallas_call(
        _mlp_kernel,
        out_shape=jax.ShapeDtypeStruct((B, OUT_DIM), pooled_output.dtype),
        grid_spec=pltpu.PrefetchScalarGridSpec(
            num_scalar_prefetch=0,
            grid=(nb, nk),
            in_specs=[
                pl.BlockSpec((TB, TK), lambda b, k: (b, k)),          # x: pipelined over B and K
                pl.BlockSpec((TK, HID_DIM), lambda b, k: (k, 0)),     # w1: resident across B
                pl.BlockSpec((1, HID_DIM), lambda b, k: (0, 0)),      # b1: resident
                pl.BlockSpec((1, HID_DIM), lambda b, k: (0, 0)),      # w2 row: resident
                pl.BlockSpec(memory_space=pltpu.MemorySpace.SMEM),    # b2 scalar in SMEM
            ],
            out_specs=pl.BlockSpec((TB, OUT_DIM), lambda b, k: (b, 0)),
            scratch_shapes=[pltpu.VMEM((TB, HID_DIM), jnp.float32)],  # layer-1 accumulator
        ),
        compiler_params=pltpu.CompilerParams(
            dimension_semantics=("parallel", "arbitrary"),
            vmem_limit_bytes=vmem_limit,
        ),
        cost_estimate=cost,
    )(pooled_output, w1, b1, w2_row, b2)
    return out


@jax.jit
def mse_loss(pred, targets):
    # Tiny (B,1) reduction: plain JAX, no extra kernel launch.
    d = pred.astype(jnp.float32) - targets.astype(jnp.float32)
    return jnp.mean(d * d)


def value_prediction_head_forward(pooled_output, params, targets=None):
    """Mirrors ValuePredictionHead.forward: returns (value_pred,) or (loss, value_pred)."""
    value_pred = value_prediction_head(
        pooled_output, params["w1"], params["b1"], params["w2_row"], params["b2"]
    )
    outputs = (value_pred,)
    if targets is not None:
        outputs = (mse_loss(value_pred, targets),) + outputs
    return outputs


def init_params(key, hidden_size, dtype=jnp.float32):
    """Shapes matching the module; weight_norm(dim=None) folded into effective weights.

    g = ||v||_F at init, so effective W == v at init; biases are zero per _init_weights.
    w2 is stored as a (1, 1280) row for the in-kernel lane reduction.
    """
    k1, k2 = jax.random.split(key)
    bound1 = 1.0 / jnp.sqrt(hidden_size)
    bound2 = 1.0 / jnp.sqrt(HID_DIM)
    v1 = jax.random.uniform(k1, (hidden_size, HID_DIM), jnp.float32, -bound1, bound1)
    v2 = jax.random.uniform(k2, (1, HID_DIM), jnp.float32, -bound2, bound2)
    g1 = jnp.linalg.norm(v1)  # scalar g (weight_norm dim=None)
    g2 = jnp.linalg.norm(v2)
    w1 = (g1 * v1 / jnp.linalg.norm(v1)).astype(dtype)      # == v1 at init
    w2_row = (g2 * v2 / jnp.linalg.norm(v2)).astype(dtype)  # == v2 at init
    b1 = jnp.zeros((1, HID_DIM), dtype)
    b2 = jnp.zeros((1, OUT_DIM), jnp.float32)
    return {"w1": w1, "b1": b1, "w2_row": w2_row, "b2": b2}


if __name__ == "__main__":
    key = jax.random.PRNGKey(0)
    k_x, k_t, k_p = jax.random.split(key, 3)

    batch, hidden_size = 2, 32
    pooled_output = jax.random.normal(k_x, (batch, hidden_size), jnp.float32)
    targets = jax.random.normal(k_t, (batch, OUT_DIM), jnp.float32)

    params = init_params(k_p, hidden_size)

    # Forward without targets: (value_pred,)
    (value_pred,) = value_prediction_head_forward(pooled_output, params)
    value_pred = jax.block_until_ready(value_pred)

    # Forward with targets: (loss, value_pred)
    loss, value_pred2 = value_prediction_head_forward(pooled_output, params, targets)
    loss = jax.block_until_ready(loss)
    value_pred2 = jax.block_until_ready(value_pred2)

    # Reference check in plain JAX.
    h_ref = jnp.maximum(pooled_output @ params["w1"] + params["b1"], 0.0)
    y_ref = h_ref @ params["w2_row"].T + params["b2"]
    loss_ref = jnp.mean((y_ref - targets) ** 2)
    assert value_pred.shape == (batch, 1)
    assert jnp.allclose(value_pred, y_ref, atol=1e-5, rtol=1e-5)
    assert jnp.allclose(value_pred2, y_ref, atol=1e-5, rtol=1e-5)
    assert jnp.allclose(loss, loss_ref, atol=1e-5, rtol=1e-5)

    print("KERNEL_OK")
</pallas_src>

<mosaic_0001>
module attributes {stable_mosaic.version = 11 : i64} {
  func.func @_mlp_kernel(%arg0: i32, %arg1: i32, %arg2: memref<2x32xf32, #tpu.memory_space<vmem>>, %arg3: memref<32x1280xf32, #tpu.memory_space<vmem>>, %arg4: memref<1x1280xf32, #tpu.memory_space<vmem>>, %arg5: memref<1x1280xf32, #tpu.memory_space<vmem>>, %arg6: memref<1x1xf32, #tpu.memory_space<smem>>, %arg7: memref<2x1xf32, #tpu.memory_space<vmem>>, %arg8: memref<2x1280xf32, #tpu.memory_space<vmem>>) attributes {dimension_semantics = [#tpu.dimension_semantics<parallel>, #tpu.dimension_semantics<arbitrary>], iteration_bounds = array<i64: 1, 1>, scalar_prefetch = 0 : i64, scratch_operands = 1 : i64, tpu.core_type = #tpu.core_type<tc>, window_params = [{transform_indices = @transform_0, window_bounds = array<i64: 2, 32>}, {transform_indices = @transform_1, window_bounds = array<i64: 32, 1280>}, {pipeline_mode = #tpu.pipeline_mode<synchronous>, transform_indices = @transform_2, window_bounds = array<i64: 1, 1280>}, {pipeline_mode = #tpu.pipeline_mode<synchronous>, transform_indices = @transform_3, window_bounds = array<i64: 1, 1280>}, {transform_indices = @transform_4, window_bounds = array<i64: 1, 1>}, {transform_indices = @transform_5, window_bounds = array<i64: 2, 1>}]} {
    %c0_i32 = arith.constant 0 : i32
    %0 = arith.cmpi eq, %arg1, %c0_i32 : i32
    %1 = arith.extui %0 : i1 to i32
    %c0_i32_0 = arith.constant 0 : i32
    %2 = arith.cmpi ne, %1, %c0_i32_0 : i32
    scf.if %2 {
      %cst_10 = arith.constant 0.000000e+00 : f32
      %12 = vector.broadcast %cst_10 : f32 to vector<2x1280xf32>
      %c0_11 = arith.constant 0 : index
      %c0_12 = arith.constant 0 : index
      %13 = vector.load %arg8[%c0_11, %c0_12] : memref<2x1280xf32, #tpu.memory_space<vmem>>, vector<2x1280xf32>
      tpu.vector_store %arg8[%c0_11, %c0_12], %12 {strides = array<i32>} : memref<2x1280xf32, #tpu.memory_space<vmem>>, vector<2x1280xf32>,
    } else {
    }
    %c0 = arith.constant 0 : index
    %c0_1 = arith.constant 0 : index
    %3 = vector.load %arg8[%c0, %c0_1] : memref<2x1280xf32, #tpu.memory_space<vmem>>, vector<2x1280xf32>
    %c0_2 = arith.constant 0 : index
    %c0_3 = arith.constant 0 : index
    %4 = vector.load %arg2[%c0_2, %c0_3] : memref<2x32xf32, #tpu.memory_space<vmem>>, vector<2x32xf32>
    %c0_4 = arith.constant 0 : index
    %c0_5 = arith.constant 0 : index
    %5 = vector.load %arg3[%c0_4, %c0_5] : memref<32x1280xf32, #tpu.memory_space<vmem>>, vector<32x1280xf32>
    %cst = arith.constant dense<0.000000e+00> : vector<2x1280xf32>
    %6 = tpu.matmul %4, %5, %cst {dimension_numbers = #tpu.dot_dimension_numbers<[1], [0], [0], [1], [0, 0, 1, 1], [], []>} : vector<2x32xf32>, vector<32x1280xf32>, vector<2x1280xf32> -> vector<2x1280xf32>
    %7 = arith.addf %3, %6 : vector<2x1280xf32>
    %c0_6 = arith.constant 0 : index
    %c0_7 = arith.constant 0 : index
    %8 = vector.load %arg8[%c0_6, %c0_7] : memref<2x1280xf32, #tpu.memory_space<vmem>>, vector<2x1280xf32>
    tpu.vector_store %arg8[%c0_6, %c0_7], %7 {strides = array<i32>} : memref<2x1280xf32, #tpu.memory_space<vmem>>, vector<2x1280xf32>,
    %c0_i32_8 = arith.constant 0 : i32
    %9 = arith.cmpi eq, %arg1, %c0_i32_8 : i32
    %10 = arith.extui %9 : i1 to i32
    %c0_i32_9 = arith.constant 0 : i32
    %11 = arith.cmpi ne, %10, %c0_i32_9 : i32
    scf.if %11 {
      %c0_10 = arith.constant 0 : index
      %c0_11 = arith.constant 0 : index
      %12 = vector.load %arg8[%c0_10, %c0_11] : memref<2x1280xf32, #tpu.memory_space<vmem>>, vector<2x1280xf32>
      %c0_12 = arith.constant 0 : index
      %c0_13 = arith.constant 0 : index
      %13 = vector.load %arg4[%c0_12, %c0_13] : memref<1x1280xf32, #tpu.memory_space<vmem>>, vector<1x1280xf32>
      %14 = vector.broadcast %13 : vector<1x1280xf32> to vector<2x1280xf32>
      %15 = arith.addf %12, %14 : vector<2x1280xf32>
      %cst_14 = arith.constant 0.000000e+00 : f32
      %16 = vector.broadcast %cst_14 : f32 to vector<2x1280xf32>
      %17 = arith.maximumf %15, %16 : vector<2x1280xf32>
      %c0_15 = arith.constant 0 : index
      %c0_16 = arith.constant 0 : index
      %18 = vector.load %arg5[%c0_15, %c0_16] : memref<1x1280xf32, #tpu.memory_space<vmem>>, vector<1x1280xf32>
      %19 = vector.broadcast %18 : vector<1x1280xf32> to vector<2x1280xf32>
      %20 = arith.mulf %17, %19 : vector<2x1280xf32>
      %cst_17 = arith.constant dense<0.000000e+00> : vector<2xf32>
      %21 = vector.multi_reduction <add>, %20, %cst_17 [1] : vector<2x1280xf32> to vector<2xf32>
      %22 = vector.shape_cast %21 : vector<2xf32> to vector<2x1xf32>
      %c0_18 = arith.constant 0 : index
      %c0_19 = arith.constant 0 : index
      %23 = memref.load %arg6[%c0_18, %c0_19] : memref<1x1xf32, #tpu.memory_space<smem>>
      %24 = vector.broadcast %23 : f32 to vector<2x1xf32>
      %25 = arith.addf %22, %24 : vector<2x1xf32>
      %c0_20 = arith.constant 0 : index
      %c0_21 = arith.constant 0 : index
      %26 = vector.load %arg7[%c0_20, %c0_21] : memref<2x1xf32, #tpu.memory_space<vmem>>, vector<2x1xf32>
      tpu.vector_store %arg7[%c0_20, %c0_21], %25 {strides = array<i32>} : memref<2x1xf32, #tpu.memory_space<vmem>>, vector<2x1xf32>,
    } else {
    }
    return
  }
  func.func @transform_0(%arg0: i32, %arg1: i32) -> (i32, i32) {
    %c0_i32 = arith.constant 0 : i32
    return %arg0, %arg1 : i32, i32
  }
  func.func @transform_1(%arg0: i32, %arg1: i32) -> (i32, i32) {
    %c0_i32 = arith.constant 0 : i32
    %c0_i32_0 = arith.constant 0 : i32
    return %arg1, %c0_i32 : i32, i32
  }
  func.func @transform_2(%arg0: i32, %arg1: i32) -> (i32, i32) {
    %c0_i32 = arith.constant 0 : i32
    %c0_i32_0 = arith.constant 0 : i32
    %c0_i32_1 = arith.constant 0 : i32
    return %c0_i32, %c0_i32_0 : i32, i32
  }
  func.func @transform_3(%arg0: i32, %arg1: i32) -> (i32, i32) {
    %c0_i32 = arith.constant 0 : i32
    %c0_i32_0 = arith.constant 0 : i32
    %c0_i32_1 = arith.constant 0 : i32
    return %c0_i32, %c0_i32_0 : i32, i32
  }
  func.func @transform_4(%arg0: i32, %arg1: i32) -> (i32, i32) {
    %c0_i32 = arith.constant 0 : i32
    %c0_i32_0 = arith.constant 0 : i32
    %c0_i32_1 = arith.constant 0 : i32
    return %c0_i32, %c0_i32_0 : i32, i32
  }
  func.func @transform_5(%arg0: i32, %arg1: i32) -> (i32, i32) {
    %c0_i32 = arith.constant 0 : i32
    %c0_i32_0 = arith.constant 0 : i32
    return %arg0, %c0_i32 : i32, i32
  }
}

</mosaic_0001>

<llo_original>
// kernel: value_prediction_head.1
$region0: #{value_prediction_head.1}
  #allocation0 [shape = 'u32[]', space=smem, size = 0x4, offset = 0x4, fixed_abs, tag = 'smem constant byte address 0x4 - core index']
  #allocation1 [shape = 'u32[144,128]{1,0:T(1,128)}', space=vmem, size = 0x12000, scoped, tag = 'internal scratch']
  #allocation2 [shape = 'f32[2,1280]{1,0:T(2,128)}', space=vmem, size = 0x2800, scoped, tag = 'scratch operand']
  #allocation3 [shape = 'f32[1,1]{1,0:T(1,128)S(6)}', space=smem, size = 0x200, scoped, tag = 'scoped memory for value_prediction_head.1']
  %s0 = inlined_call_operand.hbm [shape: f32[2,32], index: 0, kind: input, shape index: {}]
  %s1 = inlined_call_operand.hbm [shape: f32[32,1280], index: 1, kind: input, shape index: {}]
  %s2 = inlined_call_operand.vmem [shape: f32[1,1280], index: 2, kind: input, shape index: {}]
  %s3 = inlined_call_operand.hbm [shape: f32[1,1280], index: 3, kind: input, shape index: {}]
  %s4 = inlined_call_operand.<no memory space> [shape: f32[1,1], index: 4, kind: input, shape index: {}]
  %s5 = inlined_call_operand.vmem [shape: f32[2,1], index: 5, kind: output, shape index: {}]
  %s6 = sld [smem:[#allocation0]]
  $region50: #{value_prediction_head.1} parent=0
    _
  %s8 = ssub.s32 1, %s6
  %s9 = scalar_select 0, %s8, %s6
  %10 = sst [smem:[#allocation3]] %s4
  $region1: #{value_prediction_head.1} parent=0
    #allocation4 [shape = 'u8[1024]{0}', space=vmem, size = 0x400, scoped, tag = 'input window, operand 0, single buffered']
    #allocation5 [shape = 's32[1]{0}', space=sflag, size = 0x4, scoped, tag = 'scoped memory for value_prediction_head.1']
    #allocation6 [shape = 'u8[163840]{0}', space=vmem, size = 0x28000, scoped, tag = 'input window, operand 1, single buffered']
    #allocation7 [shape = 's32[1]{0}', space=sflag, size = 0x4, scoped, tag = 'scoped memory for value_prediction_head.1']
    #allocation8 [shape = 'u8[5120]{0}', space=vmem, size = 0x1400, scoped, tag = 'input window, operand 3, single buffered']
    %11 = vsyncpa [#allocation5], 0
    %12 = vsyncpa [#allocation7], 0
    // Predicated region
    $region2: #{value_prediction_head.1} parent=1 // pred_check
      _
    $region3: #{value_prediction_head.1} parent=1 // pred_check_branch
      %14 = sbr.rel (0) target = $region5
    $region4: #{value_prediction_head.1} parent=1 // pred_region
      %s16 = ssub.s32 32, 32
      %17 = vsyncadd [#allocation5], %s16
      %s19 = sshll.u32 [#allocation4], 4
      %s20 = int_to_ptr.vmem [resolvable:$true] %s19
      %22 = dma.hbm_to_vmem [thread:$0]  %s0, 32, %s20, [#allocation5]
    $region5: #{value_prediction_head.1} parent=1 // pred_fallthru
      _
    // Predicated region
    $region6: #{value_prediction_head.1} parent=1 // pred_check
      _
    $region7: #{value_prediction_head.1} parent=1 // pred_check_branch
      %24 = sbr.rel (0) target = $region9
    $region8: #{value_prediction_head.1} parent=1 // pred_region
      %s26 = ssub.s32 5120, 5120
      %27 = vsyncadd [#allocation7], %s26
      %s28 = sshll.u32 [#allocation6], 4
      %s29 = int_to_ptr.vmem [resolvable:$true] %s28
      %34 = dma.hbm_to_vmem [thread:$0]  %s1, 5120, %s29, [#allocation7], 1280, 1280, 80
    $region9: #{value_prediction_head.1} parent=1 // pred_fallthru
      _
    // Predicated region
    $region10: #{value_prediction_head.1} parent=1 // pred_check
      _
    $region11: #{value_prediction_head.1} parent=1 // pred_check_branch
      %36 = sbr.rel (0) target = $region13
    $region12: #{value_prediction_head.1} parent=1 // pred_region
      _
    $region13: #{value_prediction_head.1} parent=1 // pred_fallthru
      _
    // Predicated region
    $region14: #{value_prediction_head.1} parent=1 // pred_check
      _
    $region15: #{value_prediction_head.1} parent=1 // pred_check_branch
      %38 = sbr.rel (0) target = $region17
    $region16: #{value_prediction_head.1} parent=1 // pred_region
      %s40 = ssub.s32 160, 160
      %41 = vsyncadd [#allocation7], %s40
      %s43 = sshll.u32 [#allocation8], 4
      %s44 = int_to_ptr.vmem [resolvable:$true] %s43
      %46 = dma.hbm_to_vmem [thread:$0]  %s3, 160, %s44, [#allocation7]
    $region17: #{value_prediction_head.1} parent=1 // pred_fallthru
      _
    // Predicated region
    $region18: #{value_prediction_head.1} parent=1 // pred_check
      _
    $region19: #{value_prediction_head.1} parent=1 // pred_check_branch
      %48 = sbr.rel (0) target = $region21
    $region20: #{value_prediction_head.1} parent=1 // pred_region
      _
    $region21: #{value_prediction_head.1} parent=1 // pred_fallthru
      _
    // Predicated region
    $region22: #{value_prediction_head.1} parent=1 // pred_check
      _
    $region23: #{value_prediction_head.1} parent=1 // pred_check_branch
      %50 = sbr.rel (0) target = $region25
    $region24: #{value_prediction_head.1} parent=1 // pred_region
      %51 = dma.done [#allocation5], 32
    $region25: #{value_prediction_head.1} parent=1 // pred_fallthru
      _
    // Predicated region
    $region26: #{value_prediction_head.1} parent=1 // pred_check
      _
    $region27: #{value_prediction_head.1} parent=1 // pred_check_branch
      %53 = sbr.rel (0) target = $region29
    $region28: #{value_prediction_head.1} parent=1 // pred_region
      %54 = dma.done [#allocation7], 5120
    $region29: #{value_prediction_head.1} parent=1 // pred_fallthru
      _
    // Predicated region
    $region30: #{value_prediction_head.1} parent=1 // pred_check
      _
    $region31: #{value_prediction_head.1} parent=1 // pred_check_branch
      %56 = sbr.rel (0) target = $region33
    $region32: #{value_prediction_head.1} parent=1 // pred_region
      %57 = dma.done [#allocation7], 160
    $region33: #{value_prediction_head.1} parent=1 // pred_fallthru
      _
    %p58 = scmp.eq.s32.totalorder 0, 0
    // Predicated region
    $region34: #{value_prediction_head.1} parent=1 // pred_check
      %p59 = pneg %p58
    $region35: #{value_prediction_head.1} parent=1 // pred_check_branch
      %61 = sbr.rel (%p59) target = $region37
    $region36: #{value_prediction_head.1} parent=1 // pred_region
      %62 = vst [vmem:[#allocation2] sm:$0xff] 0.0
      %63 = vst [vmem:[#allocation2 + $0x8] sm:$0xff] 0.0
      %64 = vst [vmem:[#allocation2 + $0x10] sm:$0xf] 0.0
    $region37: #{value_prediction_head.1} parent=1 // pred_fallthru
      _
    %v65 = vld [vmem:[#allocation2] sm:$0xff]
    %v66 = vld [vmem:[#allocation2 + $0x8] sm:$0xff]
    %v67 = vld [vmem:[#allocation2 + $0x10] sm:$0xf]
    %v68 = vld [vmem:[#allocation4] sm:$0x3]
    %v69 = vld [vmem:[#allocation6] sm:$0xff]
    %v70 = vld [vmem:[#allocation6 + $0x8] sm:$0xff]
    %v71 = vld [vmem:[#allocation6 + $0x10] sm:$0xff]
    %v72 = vld [vmem:[#allocation6 + $0x18] sm:$0xff]
    %v73 = vld [vmem:[#allocation6 + $0x20] sm:$0xff]
    %v74 = vld [vmem:[#allocation6 + $0x28] sm:$0xff]
    %v75 = vld [vmem:[#allocation6 + $0x30] sm:$0xff]
    %v76 = vld [vmem:[#allocation6 + $0x38] sm:$0xff]
    %v77 = vld [vmem:[#allocation6 + $0x40] sm:$0xff]
    %v78 = vld [vmem:[#allocation6 + $0x48] sm:$0xff]
    %v79 = vld [vmem:[#allocation6 + $0x50] sm:$0xff]
    %v80 = vld [vmem:[#allocation6 + $0x58] sm:$0xff]
    %v81 = vld [vmem:[#allocation6 + $0x60] sm:$0xff]
    %v82 = vld [vmem:[#allocation6 + $0x68] sm:$0xff]
    %v83 = vld [vmem:[#allocation6 + $0x70] sm:$0xff]
    %v84 = vld [vmem:[#allocation6 + $0x78] sm:$0xff]
    %v85 = vld [vmem:[#allocation6 + $0x80] sm:$0xff]
    %v86 = vld [vmem:[#allocation6 + $0x88] sm:$0xff]
    %v87 = vld [vmem:[#allocation6 + $0x90] sm:$0xff]
    %v88 = vld [vmem:[#allocation6 + $0x98] sm:$0xff]
    %v89 = vld [vmem:[#allocation6 + $0xa0] sm:$0xff]
    %v90 = vld [vmem:[#allocation6 + $0xa8] sm:$0xff]
    %v91 = vld [vmem:[#allocation6 + $0xb0] sm:$0xff]
    %v92 = vld [vmem:[#allocation6 + $0xb8] sm:$0xff]
    %v93 = vld [vmem:[#allocation6 + $0xc0] sm:$0xff]
    %v94 = vld [vmem:[#allocation6 + $0xc8] sm:$0xff]
    %v95 = vld [vmem:[#allocation6 + $0xd0] sm:$0xff]
    %v96 = vld [vmem:[#allocation6 + $0xd8] sm:$0xff]
    %v97 = vld [vmem:[#allocation6 + $0xe0] sm:$0xff]
    %v98 = vld [vmem:[#allocation6 + $0xe8] sm:$0xff]
    %v99 = vld [vmem:[#allocation6 + $0xf0] sm:$0xff]
    %v100 = vld [vmem:[#allocation6 + $0xf8] sm:$0xff]
    %v101 = vld [vmem:[#allocation6 + $0x100] sm:$0xff]
    %v102 = vld [vmem:[#allocation6 + $0x108] sm:$0xff]
    %v103 = vld [vmem:[#allocation6 + $0x110] sm:$0xff]
    %v104 = vld [vmem:[#allocation6 + $0x118] sm:$0xff]
    %v105 = vld [vmem:[#allocation6 + $0x120] sm:$0xff]
    %v106 = vld [vmem:[#allocation6 + $0x128] sm:$0xff]
    %v107 = vld [vmem:[#allocation6 + $0x130] sm:$0xff]
    %v108 = vld [vmem:[#allocation6 + $0x138] sm:$0xff]
    %vm109 = vcmask 261120
    %v111 = vsel %vm109, %v68, 0
    %113 = vmatprep.subr.mxu0 %v70
    %114 = vmatpush1.msra.mxu0 %v69
    %115 = vmatprep.subr.mxu0 %v80
    %116 = vmatpush1.msra.mxu0 %v79
    %117 = vmatprep.subr.mxu0 %v90
    %118 = vmatpush1.msra.mxu0 %v89
    %119 = vmatprep.subr.mxu0 %v100
    %120 = vmatpush1.msra.mxu0 %v99
    %121 = vmatprep.subr.mxu0 0.0
    %122 = vmatpush1.msra.mxu0 0.0
    %123 = vmatprep.subr.mxu0 0.0
    %124 = vmatpush1.msra.mxu0 0.0
    %125 = vmatprep.subr.mxu0 0.0
    %126 = vmatpush1.msra.mxu0 0.0
    %127 = vmatprep.subr.mxu0 0.0
    %128 = vmatpush1.msra.mxu0 0.0
    %129 = vmatprep.subr.mxu0 0.0
    %130 = vmatpush1.msra.mxu0 0.0
    %131 = vmatprep.subr.mxu0 0.0
    %132 = vmatpush1.msra.mxu0 0.0
    %133 = vmatprep.subr.mxu0 0.0
    %134 = vmatpush1.msra.mxu0 0.0
    %135 = vmatprep.subr.mxu0 0.0
    %136 = vmatpush1.msra.mxu0 0.0
    %137 = vmatprep.subr.mxu0 0.0
    %138 = vmatpush1.msra.mxu0 0.0
    %139 = vmatprep.subr.mxu0 0.0
    %140 = vmatpush1.msra.mxu0 0.0
    %141 = vmatprep.subr.mxu0 0.0
    %142 = vmatpush1.msra.mxu0 0.0
    %143 = vmatprep.subr.mxu0 0.0
    %144 = vmatpush1.msra.mxu0 0.0
    %145 = vmatprep.subr.mxu0 0.0
    %146 = vmatpush1.msra.mxu0 0.0
    %147 = vmatprep.subr.mxu0 0.0
    %148 = vmatpush1.msra.mxu0 0.0
    %149 = vmatprep.subr.mxu0 0.0
    %150 = vmatpush1.msra.mxu0 0.0
    %151 = vmatprep.subr.mxu0 0.0
    %152 = vmatpush1.msra.mxu0 0.0
    %153 = vmatprep.subr.mxu0 0.0
    %154 = vmatpush1.msra.mxu0 0.0
    %155 = vmatprep.subr.mxu0 0.0
    %156 = vmatpush1.msra.mxu0 0.0
    %157 = vmatprep.subr.mxu0 0.0
    %158 = vmatpush1.msra.mxu0 0.0
    %159 = vmatprep.subr.mxu0 0.0
    %160 = vmatpush1.msra.mxu0 0.0
    %161 = vmatprep.subr.mxu0 0.0
    %162 = vmatpush1.msra.mxu0 0.0
    %163 = vmatprep.subr.mxu0 0.0
    %164 = vmatpush1.msra.mxu0 0.0
    %165 = vmatprep.subr.mxu0 0.0
    %166 = vmatpush1.msra.mxu0 0.0
    %167 = vmatprep.subr.mxu0 0.0
    %168 = vmatpush1.msra.mxu0 0.0
    %169 = vmatprep.subr.mxu0 0.0
    %170 = vmatpush1.msra.mxu0 0.0
    %171 = vmatprep.subr.mxu0 0.0
    %172 = vmatpush1.msra.mxu0 0.0
    %173 = vmatprep.subr.mxu0 0.0
    %174 = vmatpush1.msra.mxu0 0.0
    %175 = vmatprep.subr.mxu0 0.0
    %176 = vmatpush1.msra.mxu0 0.0
    %177 = vmatprep.mubr.f32.mxu0 0.0
    %178 = vmatmul.mubr.f32.gmra.mrb[0].mxu0 %v111
    %v179 = vpop.f32.mrb[0].mxu0
    %v180 = vadd.f32 0.0, %v179
    %v181 = vpop.f32.mrb[0].mxu0
    %v182 = vadd.f32 0.0, %v181
    %183 = vdwg.mxu0
    %184 = vmatprep.subr.mxu0 %v72
    %185 = vmatpush1.msra.mxu0 %v71
    %186 = vmatprep.subr.mxu0 %v82
    %187 = vmatpush1.msra.mxu0 %v81
    %188 = vmatprep.subr.mxu0 %v92
    %189 = vmatpush1.msra.mxu0 %v91
    %190 = vmatprep.subr.mxu0 %v102
    %191 = vmatpush1.msra.mxu0 %v101
    %192 = vmatprep.subr.mxu0 0.0
    %193 = vmatpush1.msra.mxu0 0.0
    %194 = vmatprep.subr.mxu0 0.0
    %195 = vmatpush1.msra.mxu0 0.0
    %196 = vmatprep.subr.mxu0 0.0
    %197 = vmatpush1.msra.mxu0 0.0
    %198 = vmatprep.subr.mxu0 0.0
    %199 = vmatpush1.msra.mxu0 0.0
    %200 = vmatprep.subr.mxu0 0.0
    %201 = vmatpush1.msra.mxu0 0.0
    %202 = vmatprep.subr.mxu0 0.0
    %203 = vmatpush1.msra.mxu0 0.0
    %204 = vmatprep.subr.mxu0 0.0
    %205 = vmatpush1.msra.mxu0 0.0
    %206 = vmatprep.subr.mxu0 0.0
    %207 = vmatpush1.msra.mxu0 0.0
    %208 = vmatprep.subr.mxu0 0.0
    %209 = vmatpush1.msra.mxu0 0.0
    %210 = vmatprep.subr.mxu0 0.0
    %211 = vmatpush1.msra.mxu0 0.0
    %212 = vmatprep.subr.mxu0 0.0
    %213 = vmatpush1.msra.mxu0 0.0
    %214 = vmatprep.subr.mxu0 0.0
    %215 = vmatpush1.msra.mxu0 0.0
    %216 = vmatprep.subr.mxu0 0.0
    %217 = vmatpush1.msra.mxu0 0.0
    %218 = vmatprep.subr.mxu0 0.0
    %219 = vmatpush1.msra.mxu0 0.0
    %220 = vmatprep.subr.mxu0 0.0
    %221 = vmatpush1.msra.mxu0 0.0
    %222 = vmatprep.subr.mxu0 0.0
    %223 = vmatpush1.msra.mxu0 0.0
    %224 = vmatprep.subr.mxu0 0.0
    %225 = vmatpush1.msra.mxu0 0.0
    %226 = vmatprep.subr.mxu0 0.0
    %227 = vmatpush1.msra.mxu0 0.0
    %228 = vmatprep.subr.mxu0 0.0
    %229 = vmatpush1.msra.mxu0 0.0
    %230 = vmatprep.subr.mxu0 0.0
    %231 = vmatpush1.msra.mxu0 0.0
    %232 = vmatprep.subr.mxu0 0.0
    %233 = vmatpush1.msra.mxu0 0.0
    %234 = vmatprep.subr.mxu0 0.0
    %235 = vmatpush1.msra.mxu0 0.0
    %236 = vmatprep.subr.mxu0 0.0
    %237 = vmatpush1.msra.mxu0 0.0
    %238 = vmatprep.subr.mxu0 0.0
    %239 = vmatpush1.msra.mxu0 0.0
    %240 = vmatprep.subr.mxu0 0.0
    %241 = vmatpush1.msra.mxu0 0.0
    %242 = vmatprep.subr.mxu0 0.0
    %243 = vmatpush1.msra.mxu0 0.0
    %244 = vmatprep.subr.mxu0 0.0
    %245 = vmatpush1.msra.mxu0 0.0
    %246 = vmatprep.subr.mxu0 0.0
    %247 = vmatpush1.msra.mxu0 0.0
    %248 = vmatprep.mubr.f32.mxu0 0.0
    %249 = vmatmul.mubr.f32.gmra.mrb[0].mxu0 %v111
    %v250 = vpop.f32.mrb[0].mxu0
    %v251 = vadd.f32 0.0, %v250
    %v252 = vpop.f32.mrb[0].mxu0
    %v253 = vadd.f32 0.0, %v252
    %254 = vdwg.mxu0
    %255 = vmatprep.subr.mxu0 %v74
    %256 = vmatpush1.msra.mxu0 %v73
    %257 = vmatprep.subr.mxu0 %v84
    %258 = vmatpush1.msra.mxu0 %v83
    %259 = vmatprep.subr.mxu0 %v94
    %260 = vmatpush1.msra.mxu0 %v93
    %261 = vmatprep.subr.mxu0 %v104
    %262 = vmatpush1.msra.mxu0 %v103
    %263 = vmatprep.subr.mxu0 0.0
    %264 = vmatpush1.msra.mxu0 0.0
    %265 = vmatprep.subr.mxu0 0.0
    %266 = vmatpush1.msra.mxu0 0.0
    %267 = vmatprep.subr.mxu0 0.0
    %268 = vmatpush1.msra.mxu0 0.0
    %269 = vmatprep.subr.mxu0 0.0
    %270 = vmatpush1.msra.mxu0 0.0
    %271 = vmatprep.subr.mxu0 0.0
    %272 = vmatpush1.msra.mxu0 0.0
    %273 = vmatprep.subr.mxu0 0.0
    %274 = vmatpush1.msra.mxu0 0.0
    %275 = vmatprep.subr.mxu0 0.0
    %276 = vmatpush1.msra.mxu0 0.0
    %277 = vmatprep.subr.mxu0 0.0
    %278 = vmatpush1.msra.mxu0 0.0
    %279 = vmatprep.subr.mxu0 0.0
    %280 = vmatpush1.msra.mxu0 0.0
    %281 = vmatprep.subr.mxu0 0.0
    %282 = vmatpush1.msra.mxu0 0.0
    %283 = vmatprep.subr.mxu0 0.0
    %284 = vmatpush1.msra.mxu0 0.0
    %285 = vmatprep.subr.mxu0 0.0
    %286 = vmatpush1.msra.mxu0 0.0
    %287 = vmatprep.subr.mxu0 0.0
    %288 = vmatpush1.msra.mxu0 0.0
    %289 = vmatprep.subr.mxu0 0.0
    %290 = vmatpush1.msra.mxu0 0.0
    %291 = vmatprep.subr.mxu0 0.0
    %292 = vmatpush1.msra.mxu0 0.0
    %293 = vmatprep.subr.mxu0 0.0
    %294 = vmatpush1.msra.mxu0 0.0
    %295 = vmatprep.subr.mxu0 0.0
    %296 = vmatpush1.msra.mxu0 0.0
    %297 = vmatprep.subr.mxu0 0.0
    %298 = vmatpush1.msra.mxu0 0.0
    %299 = vmatprep.subr.mxu0 0.0
    %300 = vmatpush1.msra.mxu0 0.0
    %301 = vmatprep.subr.mxu0 0.0
    %302 = vmatpush1.msra.mxu0 0.0
    %303 = vmatprep.subr.mxu0 0.0
    %304 = vmatpush1.msra.mxu0 0.0
    %305 = vmatprep.subr.mxu0 0.0
    %306 = vmatpush1.msra.mxu0 0.0
    %307 = vmatprep.subr.mxu0 0.0
    %308 = vmatpush1.msra.mxu0 0.0
    %309 = vmatprep.subr.mxu0 0.0
    %310 = vmatpush1.msra.mxu0 0.0
    %311 = vmatprep.subr.mxu0 0.0
    %312 = vmatpush1.msra.mxu0 0.0
    %313 = vmatprep.subr.mxu0 0.0
    %314 = vmatpush1.msra.mxu0 0.0
    %315 = vmatprep.subr.mxu0 0.0
    %316 = vmatpush1.msra.mxu0 0.0
    %317 = vmatprep.subr.mxu0 0.0
    %318 = vmatpush1.msra.mxu0 0.0
    %319 = vmatprep.mubr.f32.mxu0 0.0
    %320 = vmatmul.mubr.f32.gmra.mrb[0].mxu0 %v111
    %v321 = vpop.f32.mrb[0].mxu0
    %v322 = vadd.f32 0.0, %v321
    %v323 = vpop.f32.mrb[0].mxu0
    %v324 = vadd.f32 0.0, %v323
    %325 = vdwg.mxu0
    %326 = vmatprep.subr.mxu0 %v76
    %327 = vmatpush1.msra.mxu0 %v75
    %328 = vmatprep.subr.mxu0 %v86
    %329 = vmatpush1.msra.mxu0 %v85
    %330 = vmatprep.subr.mxu0 %v96
    %331 = vmatpush1.msra.mxu0 %v95
    %332 = vmatprep.subr.mxu0 %v106
    %333 = vmatpush1.msra.mxu0 %v105
    %334 = vmatprep.subr.mxu0 0.0
    %335 = vmatpush1.msra.mxu0 0.0
    %336 = vmatprep.subr.mxu0 0.0
    %337 = vmatpush1.msra.mxu0 0.0
    %338 = vmatprep.subr.mxu0 0.0
    %339 = vmatpush1.msra.mxu0 0.0
    %340 = vmatprep.subr.mxu0 0.0
    %341 = vmatpush1.msra.mxu0 0.0
    %342 = vmatprep.subr.mxu0 0.0
    %343 = vmatpush1.msra.mxu0 0.0
    %344 = vmatprep.subr.mxu0 0.0
    %345 = vmatpush1.msra.mxu0 0.0
    %346 = vmatprep.subr.mxu0 0.0
    %347 = vmatpush1.msra.mxu0 0.0
    %348 = vmatprep.subr.mxu0 0.0
    %349 = vmatpush1.msra.mxu0 0.0
    %350 = vmatprep.subr.mxu0 0.0
    %351 = vmatpush1.msra.mxu0 0.0
    %352 = vmatprep.subr.mxu0 0.0
    %353 = vmatpush1.msra.mxu0 0.0
    %354 = vmatprep.subr.mxu0 0.0
    %355 = vmatpush1.msra.mxu0 0.0
    %356 = vmatprep.subr.mxu0 0.0
    %357 = vmatpush1.msra.mxu0 0.0
    %358 = vmatprep.subr.mxu0 0.0
    %359 = vmatpush1.msra.mxu0 0.0
    %360 = vmatprep.subr.mxu0 0.0
    %361 = vmatpush1.msra.mxu0 0.0
    %362 = vmatprep.subr.mxu0 0.0
    %363 = vmatpush1.msra.mxu0 0.0
    %364 = vmatprep.subr.mxu0 0.0
    %365 = vmatpush1.msra.mxu0 0.0
    %366 = vmatprep.subr.mxu0 0.0
    %367 = vmatpush1.msra.mxu0 0.0
    %368 = vmatprep.subr.mxu0 0.0
    %369 = vmatpush1.msra.mxu0 0.0
    %370 = vmatprep.subr.mxu0 0.0
    %371 = vmatpush1.msra.mxu0 0.0
    %372 = vmatprep.subr.mxu0 0.0
    %373 = vmatpush1.msra.mxu0 0.0
    %374 = vmatprep.subr.mxu0 0.0
    %375 = vmatpush1.msra.mxu0 0.0
    %376 = vmatprep.subr.mxu0 0.0
    %377 = vmatpush1.msra.mxu0 0.0
    %378 = vmatprep.subr.mxu0 0.0
    %379 = vmatpush1.msra.mxu0 0.0
    %380 = vmatprep.subr.mxu0 0.0
    %381 = vmatpush1.msra.mxu0 0.0
    %382 = vmatprep.subr.mxu0 0.0
    %383 = vmatpush1.msra.mxu0 0.0
    %384 = vmatprep.subr.mxu0 0.0
    %385 = vmatpush1.msra.mxu0 0.0
    %386 = vmatprep.subr.mxu0 0.0
    %387 = vmatpush1.msra.mxu0 0.0
    %388 = vmatprep.subr.mxu0 0.0
    %389 = vmatpush1.msra.mxu0 0.0
    %390 = vmatprep.mubr.f32.mxu0 0.0
    %391 = vmatmul.mubr.f32.gmra.mrb[0].mxu0 %v111
    %v392 = vpop.f32.mrb[0].mxu0
    %v393 = vadd.f32 0.0, %v392
    %v394 = vpop.f32.mrb[0].mxu0
    %v395 = vadd.f32 0.0, %v394
    %396 = vdwg.mxu0
    %397 = vmatprep.subr.mxu0 %v78
    %398 = vmatpush1.msra.mxu0 %v77
    %399 = vmatprep.subr.mxu0 %v88
    %400 = vmatpush1.msra.mxu0 %v87
    %401 = vmatprep.subr.mxu0 %v98
    %402 = vmatpush1.msra.mxu0 %v97
    %403 = vmatprep.subr.mxu0 %v108
    %404 = vmatpush1.msra.mxu0 %v107
    %405 = vmatprep.subr.mxu0 0.0
    %406 = vmatpush1.msra.mxu0 0.0
    %407 = vmatprep.subr.mxu0 0.0
    %408 = vmatpush1.msra.mxu0 0.0
    %409 = vmatprep.subr.mxu0 0.0
    %410 = vmatpush1.msra.mxu0 0.0
    %411 = vmatprep.subr.mxu0 0.0
    %412 = vmatpush1.msra.mxu0 0.0
    %413 = vmatprep.subr.mxu0 0.0
    %414 = vmatpush1.msra.mxu0 0.0
    %415 = vmatprep.subr.mxu0 0.0
    %416 = vmatpush1.msra.mxu0 0.0
    %417 = vmatprep.subr.mxu0 0.0
    %418 = vmatpush1.msra.mxu0 0.0
    %419 = vmatprep.subr.mxu0 0.0
    %420 = vmatpush1.msra.mxu0 0.0
    %421 = vmatprep.subr.mxu0 0.0
    %422 = vmatpush1.msra.mxu0 0.0
    %423 = vmatprep.subr.mxu0 0.0
    %424 = vmatpush1.msra.mxu0 0.0
    %425 = vmatprep.subr.mxu0 0.0
    %426 = vmatpush1.msra.mxu0 0.0
    %427 = vmatprep.subr.mxu0 0.0
    %428 = vmatpush1.msra.mxu0 0.0
    %429 = vmatprep.subr.mxu0 0.0
    %430 = vmatpush1.msra.mxu0 0.0
    %431 = vmatprep.subr.mxu0 0.0
    %432 = vmatpush1.msra.mxu0 0.0
    %433 = vmatprep.subr.mxu0 0.0
    %434 = vmatpush1.msra.mxu0 0.0
    %435 = vmatprep.subr.mxu0 0.0
    %436 = vmatpush1.msra.mxu0 0.0
    %437 = vmatprep.subr.mxu0 0.0
    %438 = vmatpush1.msra.mxu0 0.0
    %439 = vmatprep.subr.mxu0 0.0
    %440 = vmatpush1.msra.mxu0 0.0
    %441 = vmatprep.subr.mxu0 0.0
    %442 = vmatpush1.msra.mxu0 0.0
    %443 = vmatprep.subr.mxu0 0.0
    %444 = vmatpush1.msra.mxu0 0.0
    %445 = vmatprep.subr.mxu0 0.0
    %446 = vmatpush1.msra.mxu0 0.0
    %447 = vmatprep.subr.mxu0 0.0
    %448 = vmatpush1.msra.mxu0 0.0
    %449 = vmatprep.subr.mxu0 0.0
    %450 = vmatpush1.msra.mxu0 0.0
    %451 = vmatprep.subr.mxu0 0.0
    %452 = vmatpush1.msra.mxu0 0.0
    %453 = vmatprep.subr.mxu0 0.0
    %454 = vmatpush1.msra.mxu0 0.0
    %455 = vmatprep.subr.mxu0 0.0
    %456 = vmatpush1.msra.mxu0 0.0
    %457 = vmatprep.subr.mxu0 0.0
    %458 = vmatpush1.msra.mxu0 0.0
    %459 = vmatprep.subr.mxu0 0.0
    %460 = vmatpush1.msra.mxu0 0.0
    %461 = vmatprep.mubr.f32.mxu0 0.0
    %462 = vmatmul.mubr.f32.gmra.mrb[0].mxu0 %v111
    %v463 = vpop.f32.mrb[0].mxu0
    %v464 = vadd.f32 0.0, %v463
    %v465 = vpop.f32.mrb[0].mxu0
    %v466 = vadd.f32 0.0, %v465
    %467 = vdwg.mxu0
    %v478 = vcombine.low %v180, %v182
    %v479 = vcombine.low %v251, %v253
    %v481 = vunpack.c.l.s4 1983009808
    %v482 = vunpack.c.0.s8 %v481
    %v483 = vlaneseq
    %v484 = vshrl.u32 %v483, 7
    %v485 = vsub.s32 %v482, %v484
    %v486 = vrot.slane %v478, %v485
    %v488 = vunpack.c.l.s4 1983009808
    %v489 = vunpack.c.0.s8 %v488
    %v490 = vlaneseq
    %v491 = vshrl.u32 %v490, 7
    %v492 = vsub.s32 %v489, %v491
    %v493 = vrot.slane %v479, %v492
    %v494 = vcombine.low %v486, %v493
    %v495 = vcombine.low %v322, %v324
    %v496 = vcombine.low %v393, %v395
    %v498 = vunpack.c.l.s4 1983009808
    %v499 = vunpack.c.0.s8 %v498
    %v500 = vlaneseq
    %v501 = vshrl.u32 %v500, 7
    %v502 = vsub.s32 %v499, %v501
    %v503 = vrot.slane %v495, %v502
    %v505 = vunpack.c.l.s4 1983009808
    %v506 = vunpack.c.0.s8 %v505
    %v507 = vlaneseq
    %v508 = vshrl.u32 %v507, 7
    %v509 = vsub.s32 %v506, %v508
    %v510 = vrot.slane %v496, %v509
    %v511 = vcombine.low %v503, %v510
    %v512 = vcombine.low %v464, %v466
    %v514 = vunpack.c.l.s4 1983009808
    %v515 = vunpack.c.0.s8 %v514
    %v516 = vlaneseq
    %v517 = vshrl.u32 %v516, 7
    %v518 = vsub.s32 %v515, %v517
    %v519 = vrot.slane %v512, %v518
    %v523 = vadd.f32 %v65, %v494
    %v524 = vadd.f32 %v66, %v511
    %v525 = vadd.f32 %v67, %v519
    %526 = vst [vmem:[#allocation2] sm:$0xff] %v523
    %527 = vst [vmem:[#allocation2 + $0x8] sm:$0xff] %v524
    %528 = vst [vmem:[#allocation2 + $0x10] sm:$0xf] %v525
    // Predicated region
    $region38: #{value_prediction_head.1} parent=1 // pred_check
      %p529 = pneg %p58
    $region39: #{value_prediction_head.1} parent=1 // pred_check_branch
      %531 = sbr.rel (%p529) target = $region41
    $region40: #{value_prediction_head.1} parent=1 // pred_region
      %v532 = vld [vmem:[#allocation2] sm:$0xff]
      %v533 = vld [vmem:[#allocation2 + $0x8] sm:$0xff]
      %v534 = vld [vmem:[#allocation2 + $0x10] sm:$0xf]
      %v535 = vld [vmem:[%s2] sm:$0xff]
      %v536 = vld [vmem:[%s2 + $0x8] sm:$0x3]
      %v539 = vlaneseq
      %v540 = vshrl.u32 %v539, 7
      %v541 = vsub.s32 0, %v540
      %v542 = vrot.slane %v535, %v541
      %v543 = vlaneseq
      %v544 = vshrl.u32 %v543, 7
      %v545 = vsub.s32 1, %v544
      %v546 = vrot.slane %v535, %v545
      %v547 = vlaneseq
      %v548 = vshrl.u32 %v547, 7
      %v549 = vsub.s32 2, %v548
      %v550 = vrot.slane %v535, %v549
      %v551 = vlaneseq
      %v552 = vshrl.u32 %v551, 7
      %v553 = vsub.s32 3, %v552
      %v554 = vrot.slane %v535, %v553
      %v555 = vlaneseq
      %v556 = vshrl.u32 %v555, 7
      %v557 = vsub.s32 4, %v556
      %v558 = vrot.slane %v535, %v557
      %v559 = vlaneseq
      %v560 = vshrl.u32 %v559, 7
      %v561 = vsub.s32 5, %v560
      %v562 = vrot.slane %v535, %v561
      %v563 = vlaneseq
      %v564 = vshrl.u32 %v563, 7
      %v565 = vsub.s32 6, %v564
      %v566 = vrot.slane %v535, %v565
      %v567 = vlaneseq
      %v568 = vshrl.u32 %v567, 7
      %v569 = vsub.s32 7, %v568
      %v570 = vrot.slane %v535, %v569
      %v571 = vlaneseq
      %v572 = vshrl.u32 %v571, 7
      %v573 = vsub.s32 0, %v572
      %v574 = vrot.slane %v536, %v573
      %v575 = vlaneseq
      %v576 = vshrl.u32 %v575, 7
      %v577 = vsub.s32 1, %v576
      %v578 = vrot.slane %v536, %v577
      %v579 = vcombine.low %v542, %v546
      %v580 = vcombine.low %v550, %v554
      %v582 = vunpack.c.l.s4 1983009808
      %v583 = vunpack.c.0.s8 %v582
      %v584 = vlaneseq
      %v585 = vshrl.u32 %v584, 7
      %v586 = vsub.s32 %v583, %v585
      %v587 = vrot.slane %v579, %v586
      %v589 = vunpack.c.l.s4 1983009808
      %v590 = vunpack.c.0.s8 %v589
      %v591 = vlaneseq
      %v592 = vshrl.u32 %v591, 7
      %v593 = vsub.s32 %v590, %v592
      %v594 = vrot.slane %v580, %v593
      %v595 = vcombine.low %v587, %v594
      %v596 = vcombine.low %v558, %v562
      %v597 = vcombine.low %v566, %v570
      %v599 = vunpack.c.l.s4 1983009808
      %v600 = vunpack.c.0.s8 %v599
      %v601 = vlaneseq
      %v602 = vshrl.u32 %v601, 7
      %v603 = vsub.s32 %v600, %v602
      %v604 = vrot.slane %v596, %v603
      %v606 = vunpack.c.l.s4 1983009808
      %v607 = vunpack.c.0.s8 %v606
      %v608 = vlaneseq
      %v609 = vshrl.u32 %v608, 7
      %v610 = vsub.s32 %v607, %v609
      %v611 = vrot.slane %v597, %v610
      %v612 = vcombine.low %v604, %v611
      %v613 = vcombine.low %v574, %v578
      %v615 = vunpack.c.l.s4 1983009808
      %v616 = vunpack.c.0.s8 %v615
      %v617 = vlaneseq
      %v618 = vshrl.u32 %v617, 7
      %v619 = vsub.s32 %v616, %v618
      %v620 = vrot.slane %v613, %v619
      %v624 = vadd.f32 %v532, %v595
      %v625 = vadd.f32 %v533, %v612
      %v626 = vadd.f32 %v534, %v620
      %v627 = vmax.f32 %v624, 0.0
      %v628 = vmax.f32 %v625, 0.0
      %v629 = vmax.f32 %v626, 0.0
      %v630 = vld [vmem:[#allocation8] sm:$0xff]
      %v631 = vld [vmem:[#allocation8 + $0x8] sm:$0x3]
      %v634 = vlaneseq
      %v635 = vshrl.u32 %v634, 7
      %v636 = vsub.s32 0, %v635
      %v637 = vrot.slane %v630, %v636
      %v638 = vlaneseq
      %v639 = vshrl.u32 %v638, 7
      %v640 = vsub.s32 1, %v639
      %v641 = vrot.slane %v630, %v640
      %v642 = vlaneseq
      %v643 = vshrl.u32 %v642, 7
      %v644 = vsub.s32 2, %v643
      %v645 = vrot.slane %v630, %v644
      %v646 = vlaneseq
      %v647 = vshrl.u32 %v646, 7
      %v648 = vsub.s32 3, %v647
      %v649 = vrot.slane %v630, %v648
      %v650 = vlaneseq
      %v651 = vshrl.u32 %v650, 7
      %v652 = vsub.s32 4, %v651
      %v653 = vrot.slane %v630, %v652
      %v654 = vlaneseq
      %v655 = vshrl.u32 %v654, 7
      %v656 = vsub.s32 5, %v655
      %v657 = vrot.slane %v630, %v656
      %v658 = vlaneseq
      %v659 = vshrl.u32 %v658, 7
      %v660 = vsub.s32 6, %v659
      %v661 = vrot.slane %v630, %v660
      %v662 = vlaneseq
      %v663 = vshrl.u32 %v662, 7
      %v664 = vsub.s32 7, %v663
      %v665 = vrot.slane %v630, %v664
      %v666 = vlaneseq
      %v667 = vshrl.u32 %v666, 7
      %v668 = vsub.s32 0, %v667
      %v669 = vrot.slane %v631, %v668
      %v670 = vlaneseq
      %v671 = vshrl.u32 %v670, 7
      %v672 = vsub.s32 1, %v671
      %v673 = vrot.slane %v631, %v672
      %v674 = vcombine.low %v637, %v641
      %v675 = vcombine.low %v645, %v649
      %v677 = vunpack.c.l.s4 1983009808
      %v678 = vunpack.c.0.s8 %v677
      %v679 = vlaneseq
      %v680 = vshrl.u32 %v679, 7
      %v681 = vsub.s32 %v678, %v680
      %v682 = vrot.slane %v674, %v681
      %v684 = vunpack.c.l.s4 1983009808
      %v685 = vunpack.c.0.s8 %v684
      %v686 = vlaneseq
      %v687 = vshrl.u32 %v686, 7
      %v688 = vsub.s32 %v685, %v687
      %v689 = vrot.slane %v675, %v688
      %v690 = vcombine.low %v682, %v689
      %v691 = vcombine.low %v653, %v657
      %v692 = vcombine.low %v661, %v665
      %v694 = vunpack.c.l.s4 1983009808
      %v695 = vunpack.c.0.s8 %v694
      %v696 = vlaneseq
      %v697 = vshrl.u32 %v696, 7
      %v698 = vsub.s32 %v695, %v697
      %v699 = vrot.slane %v691, %v698
      %v701 = vunpack.c.l.s4 1983009808
      %v702 = vunpack.c.0.s8 %v701
      %v703 = vlaneseq
      %v704 = vshrl.u32 %v703, 7
      %v705 = vsub.s32 %v702, %v704
      %v706 = vrot.slane %v692, %v705
      %v707 = vcombine.low %v699, %v706
      %v708 = vcombine.low %v669, %v673
      %v710 = vunpack.c.l.s4 1983009808
      %v711 = vunpack.c.0.s8 %v710
      %v712 = vlaneseq
      %v713 = vshrl.u32 %v712, 7
      %v714 = vsub.s32 %v711, %v713
      %v715 = vrot.slane %v708, %v714
      %v719 = vmul.f32 %v627, %v690
      %v720 = vmul.f32 %v628, %v707
      %v721 = vmul.f32 %v629, %v715
      %v725 = vcombine.high %v719, %v719
      %v727 = vunpack.c.l.s4 1983009808
      %v728 = vunpack.c.0.s8 %v727
      %v729 = vlaneseq
      %v730 = vshrl.u32 %v729, 7
      %v731 = vsub.s32 %v728, %v730
      %v732 = vrot.slane %v719, %v731
      %v734 = vunpack.c.l.s4 1983009808
      %v735 = vunpack.c.0.s8 %v734
      %v736 = vlaneseq
      %v737 = vshrl.u32 %v736, 7
      %v738 = vsub.s32 %v735, %v737
      %v739 = vrot.slane %v725, %v738
      %v740 = vcombine.high %v732, %v732
      %v741 = vcombine.high %v739, %v739
      %v742 = vcombine.high %v720, %v720
      %v744 = vunpack.c.l.s4 1983009808
      %v745 = vunpack.c.0.s8 %v744
      %v746 = vlaneseq
      %v747 = vshrl.u32 %v746, 7
      %v748 = vsub.s32 %v745, %v747
      %v749 = vrot.slane %v720, %v748
      %v751 = vunpack.c.l.s4 1983009808
      %v752 = vunpack.c.0.s8 %v751
      %v753 = vlaneseq
      %v754 = vshrl.u32 %v753, 7
      %v755 = vsub.s32 %v752, %v754
      %v756 = vrot.slane %v742, %v755
      %v757 = vcombine.high %v749, %v749
      %v758 = vcombine.high %v756, %v756
      %v760 = vunpack.c.l.s4 1983009808
      %v761 = vunpack.c.0.s8 %v760
      %v762 = vlaneseq
      %v763 = vshrl.u32 %v762, 7
      %v764 = vsub.s32 %v761, %v763
      %v765 = vrot.slane %v721, %v764
      %v766 = vcombine.high %v765, %v765
      %vm777 = vcmask 1041408
      %v778 = vsel %vm777, %v732, 0.0
      %v779 = vsel %vm777, %v740, 0.0
      %v780 = vadd.f32 %v778, %v779
      %v781 = vsel %vm777, %v739, 0.0
      %v782 = vadd.f32 %v780, %v781
      %v783 = vsel %vm777, %v741, 0.0
      %v784 = vadd.f32 %v782, %v783
      %v785 = vsel %vm777, %v749, 0.0
      %v786 = vadd.f32 %v784, %v785
      %v787 = vsel %vm777, %v757, 0.0
      %v788 = vadd.f32 %v786, %v787
      %v789 = vsel %vm777, %v756, 0.0
      %v790 = vadd.f32 %v788, %v789
      %v791 = vsel %vm777, %v758, 0.0
      %v792 = vadd.f32 %v790, %v791
      %v793 = vsel %vm777, %v765, 0.0
      %v794 = vadd.f32 %v792, %v793
      %v795 = vsel %vm777, %v766, 0.0
      %v796 = vadd.f32 %v794, %v795
      %797 = vadd.xlane.f32.xlu0 %v796
      %v798 = vpop.xlane.xlu0 %797
      %s799 = sld [smem:[#allocation3]]
      %v800 = vstv %s799
      %v801 = vadd.f32 %v798, %v800
      %vm802 = vcmask 1024
      %803 = vst.msk [vmem:[%s5] sm:$0x3] %vm802, %v801
    $region41: #{value_prediction_head.1} parent=1 // pred_fallthru
      _
    // Predicated region
    $region42: #{value_prediction_head.1} parent=1 // pred_check
      _
    $region43: #{value_prediction_head.1} parent=1 // pred_check_branch
      %805 = sbr.rel (0) target = $region45
    $region44: #{value_prediction_head.1} parent=1 // pred_region
      _
    $region45: #{value_prediction_head.1} parent=1 // pred_fallthru
      _
    // Predicated region
    $region46: #{value_prediction_head.1} parent=1 // pred_check
      _
    $region47: #{value_prediction_head.1} parent=1 // pred_check_branch
      %807 = sbr.rel (0) target = $region49
    $region48: #{value_prediction_head.1} parent=1 // pred_region
      _
    $region49: #{value_prediction_head.1} parent=1 // pred_fallthru
      _
    %808 = vsyncpa [#allocation5], 1
    %809 = vsyncpa [#allocation7], 1

</llo_original>
